<compile_context>
chip_gen: v5e
topology: v5e:2x2
jax: 0.10.0
libtpu: 0.0.40
codegen_flags: <defaults>
</compile_context>

<pallas_src>
import jax
import jax.numpy as jnp
from jax.experimental import pallas as pl
from jax.experimental.pallas import tpu as pltpu


def _awl_kernel(packed_ref, out_ref):
    # packed_ref: (2, num) f32 in VMEM  (row 0 = losses, row 1 = params)
    # out_ref:    (1, 1)  f32 in SMEM
    l = packed_ref[0:1, :]                          # (1, num)
    p = packed_ref[1:2, :]                          # (1, num)
    p2 = p * p
    # 0.5 / p^2 * loss + log(1 + p^2)
    # (no epsilon clamp on p2: mirrors the PyTorch original's div-by-zero hazard)
    terms = 0.5 * l * pl.reciprocal(p2, approx=False) + jnp.log(1.0 + p2)
    out_ref[0, 0] = jnp.sum(terms)


def _awl_forward_pallas(losses, params):
    num = losses.shape[0]
    # Pack both operands into a single array -> a single input DMA descriptor.
    packed = jnp.stack(
        [losses.astype(jnp.float32).reshape(num),
         params.astype(jnp.float32).reshape(num)],
        axis=0,
    )  # (2, num)
    out = pl.pallas_call(
        _awl_kernel,
        out_shape=jax.ShapeDtypeStruct((1, 1), jnp.float32),
        in_specs=[pl.BlockSpec((2, num), lambda: (0, 0))],
        out_specs=pl.BlockSpec(memory_space=pltpu.MemorySpace.SMEM),
    )(packed)
    return out[0, 0]


@jax.custom_vjp
def automatic_weighted_loss(losses, params):
    """losses: (num,) per-task scalar losses; params: (num,) learnable weights.
    Returns the scalar weighted multi-task loss (same math as the PyTorch forward)."""
    return _awl_forward_pallas(losses, params)


def _awl_fwd(losses, params):
    return _awl_forward_pallas(losses, params), (losses, params)


def _awl_bwd(residuals, g):
    # Closed-form gradients (pallas_call itself is not differentiable):
    #   dL/dloss_i  =  0.5 / p_i^2
    #   dL/dparam_i = -loss_i / p_i^3 + 2 p_i / (1 + p_i^2)
    losses, params = residuals
    l = losses.astype(jnp.float32)
    p = params.astype(jnp.float32)
    p2 = p * p
    d_l = 0.5 / p2
    d_p = -l / (p2 * p) + 2.0 * p / (1.0 + p2)
    return (g * d_l).astype(losses.dtype), (g * d_p).astype(params.dtype)


automatic_weighted_loss.defvjp(_awl_fwd, _awl_bwd)


if __name__ == "__main__":
    num = 2  # matches AutomaticWeightedLoss(num=2)

    # Deterministic parameter init: torch.ones(num)
    params = jnp.ones((num,), dtype=jnp.float32)

    # Deterministic example multi-task losses, analogous to awl(loss1, loss2)
    key = jax.random.PRNGKey(0)
    losses = jax.random.uniform(key, (num,), dtype=jnp.float32, minval=0.5, maxval=2.0)

    loss_sum = automatic_weighted_loss(losses, params)
    loss_sum = jax.block_until_ready(loss_sum)

    # Pure-JAX reference (same math as the PyTorch forward)
    def ref_fn(losses_, params_):
        p2 = params_ ** 2
        return jnp.sum(0.5 / p2 * losses_ + jnp.log(1.0 + p2))

    ref = ref_fn(losses, params)
    assert jnp.allclose(loss_sum, ref, rtol=1e-6, atol=1e-6), (loss_sum, ref)

    # Gradient check for the learnable params (custom_vjp closed-form backward).
    gl, gp = jax.grad(automatic_weighted_loss, argnums=(0, 1))(losses, params)
    rl, rp = jax.grad(ref_fn, argnums=(0, 1))(losses, params)
    assert jnp.allclose(gl, rl, rtol=1e-5, atol=1e-5), (gl, rl)
    assert jnp.allclose(gp, rp, rtol=1e-5, atol=1e-5), (gp, rp)

    print("KERNEL_OK")
</pallas_src>

<mosaic_0001>
module attributes {stable_mosaic.version = 11 : i64} {
  func.func @_awl_kernel(%arg0: memref<2x2xf32, #tpu.memory_space<vmem>>, %arg1: memref<1x1xf32, #tpu.memory_space<smem>>) attributes {dimension_semantics = [], scalar_prefetch = 0 : i64, scratch_operands = 0 : i64, tpu.core_type = #tpu.core_type<tc>} {
    %c0 = arith.constant 0 : index
    %c0_0 = arith.constant 0 : index
    %0 = vector.load %arg0[%c0, %c0_0] : memref<2x2xf32, #tpu.memory_space<vmem>>, vector<1x2xf32>
    %c1 = arith.constant 1 : index
    %c0_1 = arith.constant 0 : index
    %1 = vector.load %arg0[%c1, %c0_1] : memref<2x2xf32, #tpu.memory_space<vmem>>, vector<1x2xf32>
    %2 = arith.mulf %1, %1 : vector<1x2xf32>
    %cst = arith.constant 5.000000e-01 : f32
    %3 = vector.broadcast %cst : f32 to vector<1x2xf32>
    %4 = arith.mulf %3, %0 : vector<1x2xf32>
    %5 = tpu.reciprocal %2 : vector<1x2xf32> -> vector<1x2xf32>
    %6 = arith.mulf %4, %5 : vector<1x2xf32>
    %cst_2 = arith.constant 1.000000e+00 : f32
    %7 = vector.broadcast %cst_2 : f32 to vector<1x2xf32>
    %8 = arith.addf %7, %2 : vector<1x2xf32>
    %9 = math.log %8 : vector<1x2xf32>
    %10 = arith.addf %6, %9 : vector<1x2xf32>
    %11 = vector.shape_cast %10 : vector<1x2xf32> to vector<1x1x2xf32>
    %cst_3 = arith.constant dense<0.000000e+00> : vector<1xf32>
    %12 = vector.multi_reduction <add>, %11, %cst_3 [1, 2] : vector<1x1x2xf32> to vector<1xf32>
    %13 = vector.shape_cast %12 : vector<1xf32> to vector<1x1x1xf32>
    %14 = vector.extract %13[0, 0, 0] : f32 from vector<1x1x1xf32>
    %c0_4 = arith.constant 0 : index
    %c0_5 = arith.constant 0 : index
    %15 = memref.load %arg1[%c0_4, %c0_5] : memref<1x1xf32, #tpu.memory_space<smem>>
    memref.store %14, %arg1[%c0_4, %c0_5] : memref<1x1xf32, #tpu.memory_space<smem>>
    return
  }
}

</mosaic_0001>

<llo_original>
// kernel: tpu_custom_call.1
$region0: #{tpu_custom_call.1}
  #allocation0 [shape = 'u32[]', space=smem, size = 0x4, offset = 0x4, fixed_abs, tag = 'smem constant byte address 0x4 - core index']
  #allocation1 [shape = 'u32[72,128]{1,0:T(1,128)}', space=vmem, size = 0x9000, scoped, tag = 'internal scratch']
  %s0 = inlined_call_operand.hbm [shape: f32[2,2], index: 0, kind: input, shape index: {}]
  %s1 = inlined_call_operand.hbm [shape: f32[1,1], index: 1, kind: output, shape index: {}]
  %s2 = sld [smem:[#allocation0]]
  $region18: #{tpu_custom_call.1} parent=0
    _
  %s4 = ssub.s32 1, %s2
  %s5 = scalar_select 0, %s4, %s2
  $region1: #{tpu_custom_call.1} parent=0
    #allocation2 [shape = 'u8[1024]{0}', space=vmem, size = 0x400, scoped, tag = 'input window, operand 0, single buffered']
    #allocation3 [shape = 's32[1]{0}', space=sflag, size = 0x4, scoped, tag = 'scoped memory for tpu_custom_call.1']
    #allocation4 [shape = 's32[1]{0}', space=sflag, size = 0x4, scoped, tag = 'scoped memory for tpu_custom_call.1']
    #allocation5 [shape = 'u8[512]{0}', space=smem, size = 0x200, scoped, tag = 'output window, operand 0, single buffered']
    %6 = vsyncpa [#allocation3], 0
    %7 = vsyncpa [#allocation4], 0
    // Predicated region
    $region2: #{tpu_custom_call.1} parent=1 // pred_check
      _
    $region3: #{tpu_custom_call.1} parent=1 // pred_check_branch
      %9 = sbr.rel (0) target = $region5
    $region4: #{tpu_custom_call.1} parent=1 // pred_region
      %11 = vsyncadd [#allocation3], 0
      %s13 = sshll.u32 %s0, 4
      %s14 = int_to_ptr.hbm [resolvable:$true] %s13
      %s15 = sshll.u32 [#allocation2], 4
      %s16 = int_to_ptr.vmem [resolvable:$true] %s15
      %18 = dma.hbm_to_vmem [thread:$0]  %s14, 32, %s16, [#allocation3]
    $region5: #{tpu_custom_call.1} parent=1 // pred_fallthru
      _
    // Predicated region
    $region6: #{tpu_custom_call.1} parent=1 // pred_check
      _
    $region7: #{tpu_custom_call.1} parent=1 // pred_check_branch
      %20 = sbr.rel (0) target = $region9
    $region8: #{tpu_custom_call.1} parent=1 // pred_region
      %22 = dma.done [#allocation3], 32
    $region9: #{tpu_custom_call.1} parent=1 // pred_fallthru
      _
    %v23 = vld [vmem:[#allocation2] sm:$0x1]
    %v24 = vld [vmem:[#allocation2 + $0x1] sm:$0x1]
    %v25 = vmul.f32 %v24, %v24
    %v26 = vmul.f32 %v23, 0.5
    %v27 = vrcp.pop %v25
    %v28 = vmul.f32 %v25, %v27
    %v29 = vsub.f32 1.0, %v28
    %v30 = vmul.f32 %v27, %v29
    %v31 = vadd.f32 %v27, %v30
    %vm32 = vweird.f32 %v25
    %vm33 = vweird.f32 %v27
    %vm34 = vmor %vm32, %vm33
    %v35 = vsel %vm34, %v27, %v31
    %v36 = vand.u32 2147483647, %v25
    %vm37 = vcmp.eq.f32.partialorder %v36, 8.507059e+37
    %v38 = vand.u32 %v25, 2147483648
    %v39 = vor.u32 1.1754944e-38, %v38
    %v40 = vsel %vm37, %v39, %v35
    %v41 = vmul.f32 %v26, %v40
    %v42 = vadd.f32 %v25, 1.0
    %v43 = vlog2.pop %v42
    %v44 = vmul.f32 %v43, 0.6931472
    %v45 = vadd.f32 %v41, %v44
    %vm46 = vcmask 8192
    %v47 = vsel %vm46, %v45, 0.0
    %48 = vadd.xlane.f32.xlu0 %v47
    %v49 = vpop.xlane.xlu0 %48
    %v50 = vrot.slane %v49, 4
    %v51 = vadd.f32 %v49, %v50
    %v52 = vrot.slane %v51, 2
    %v53 = vadd.f32 %v51, %v52
    %v54 = vrot.slane %v53, 1
    %v55 = vadd.f32 %v53, %v54
    %s56 = vtos %v55
    %s57 = scalar_lea.smem [#allocation5], 0
    %58 = sst [smem:[%s57]] %s56
    // Predicated region
    $region10: #{tpu_custom_call.1} parent=1 // pred_check
      _
    $region11: #{tpu_custom_call.1} parent=1 // pred_check_branch
      %60 = sbr.rel (0) target = $region13
    $region12: #{tpu_custom_call.1} parent=1 // pred_region
      %62 = vsyncadd [#allocation4], 0
      %s64 = sshll.u32 %s1, 4
      %s65 = int_to_ptr.hbm [resolvable:$true] %s64
      %67 = dma.smem_to_hbm [#allocation5], 16, %s65, [#allocation4]
    $region13: #{tpu_custom_call.1} parent=1 // pred_fallthru
      _
    // Predicated region
    $region14: #{tpu_custom_call.1} parent=1 // pred_check
      _
    $region15: #{tpu_custom_call.1} parent=1 // pred_check_branch
      %69 = sbr.rel (0) target = $region17
    $region16: #{tpu_custom_call.1} parent=1 // pred_region
      %71 = dma.done [#allocation4], 16
    $region17: #{tpu_custom_call.1} parent=1 // pred_fallthru
      _
    %72 = sfence
    %73 = vsyncpa [#allocation3], 1
    %74 = vsyncpa [#allocation4], 1

</llo_original>
